<compile_context>
chip_gen: v5e
topology: v5e:2x2
jax: 0.10.0
libtpu: 0.0.40
codegen_flags: <defaults>
</compile_context>

<pallas_src>
import math

import jax
import jax.numpy as jnp
from jax.experimental import pallas as pl
from jax.experimental.pallas import tpu as pltpu


def build_pe_buffer(d_model: int, max_h: int, max_w: int) -> jnp.ndarray:
    """Deterministic sinusoidal 2D positional-encoding buffer [max_h, max_w, d_model] (f32)."""
    assert d_model % 4 == 0, "d_model must be divisible by 4 for 2D sin/cos PE"
    n = d_model // 4
    div_term = jnp.exp(
        (2.0 * jnp.arange(n, dtype=jnp.float32)) * (-math.log(10000.0) / d_model)
    )  # (n,)

    h_pos = jnp.arange(max_h, dtype=jnp.float32)[:, None, None]   # (H,1,1)
    w_pos = jnp.arange(max_w, dtype=jnp.float32)[None, :, None]   # (1,W,1)

    ang_h = jnp.broadcast_to(h_pos * div_term, (max_h, max_w, n))  # (H,W,n)
    ang_w = jnp.broadcast_to(w_pos * div_term, (max_h, max_w, n))  # (H,W,n)

    pe = jnp.zeros((max_h, max_w, d_model), dtype=jnp.float32)
    pe = pe.at[..., 0::4].set(jnp.sin(ang_h))
    pe = pe.at[..., 1::4].set(jnp.cos(ang_h))
    pe = pe.at[..., 2::4].set(jnp.sin(ang_w))
    pe = pe.at[..., 3::4].set(jnp.cos(ang_w))
    return pe


def _add_pe_kernel(x_ref, pe_ref, o_ref):
    # x_ref: (bb, tr, L) block; pe_ref: (tr, L) tile broadcast over the batch block.
    # Add in f32 and cast once on store (no double-rounding for bf16 inputs;
    # the cast is free filler under the memory bound).
    o_ref[...] = (x_ref[...].astype(jnp.float32) + pe_ref[...]).astype(o_ref.dtype)


def _pick_row_tile(n_rows: int, row_bytes: int, target_bytes: int) -> int:
    """Largest row tile that is a multiple of 8, an exact divisor of n_rows and
    fits target_bytes; falls back to the full extent (always layout-legal)."""
    if n_rows * row_bytes <= target_bytes:
        return n_rows
    max_rows = max(8, (target_bytes // row_bytes) // 8 * 8)
    tr = (min(max_rows, n_rows) // 8) * 8
    while tr >= 8:
        if n_rows % tr == 0:
            return tr
        tr -= 8
    return n_rows


def sinusoidal_pe_2d(x: jnp.ndarray, pe_buffer: jnp.ndarray,
                     *, block_bytes: int = 2 * 1024 * 1024) -> jnp.ndarray:
    """x: [B, h, w, d_model] -> x + pe_buffer[:h, :w, :] (computed in f32)."""
    B, h, w, d = x.shape
    assert pe_buffer.shape[0] >= h and pe_buffer.shape[1] >= w and pe_buffer.shape[2] == d

    # Lane-dense collapse of the trailing dims:
    #   d already a multiple of 128 -> rows = h*w, lanes = d
    #   otherwise                   -> rows = h,   lanes = w*d
    if d % 128 == 0:
        R, L = h * w, d
    else:
        R, L = h, w * d

    # pe stays float32 (no pre-cast); slice+reshape is cheap wrapper glue.
    # NOTE: for a fixed (h, w) callers should hoist/cache this slice.
    pe2 = pe_buffer[:h, :w, :].reshape(R, L)
    x2 = x.reshape(B, R, L)

    row_bytes = L * x.dtype.itemsize

    if B * R * row_bytes <= block_bytes:
        # Tiny problem: one grid step, batch folded into the block (no grid overhead).
        bb, tr = B, R
    else:
        bb = 1
        tr = _pick_row_tile(R, row_bytes, block_bytes)

    n_b = B // bb
    n_r = pl.cdiv(R, tr)  # exact: tr divides R or tr == R

    # Grid: (row-tiles, batch) with batch innermost so the pe block index is
    # constant within the inner loop.  Both axes parallel (v7x 2-TC split).
    x_spec = pl.BlockSpec((bb, tr, L), lambda r, b: (b, r, 0))
    out_spec = pl.BlockSpec((bb, tr, L), lambda r, b: (b, r, 0))
    if n_r == 1:
        # pe tile is grid-resident (constant index map): single buffer is enough.
        pe_spec = pl.BlockSpec((tr, L), lambda r, b: (0, 0),
                               pipeline_mode=pl.Buffered(1))
    else:
        pe_spec = pl.BlockSpec((tr, L), lambda r, b: (r, 0))

    grid_spec = pltpu.PrefetchScalarGridSpec(
        num_scalar_prefetch=0,
        grid=(n_r, n_b),
        in_specs=[x_spec, pe_spec],
        out_specs=out_spec,
    )

    out2 = pl.pallas_call(
        _add_pe_kernel,
        out_shape=jax.ShapeDtypeStruct((B, R, L), x.dtype),
        grid_spec=grid_spec,
        compiler_params=pltpu.CompilerParams(
            dimension_semantics=("parallel", "parallel"),
            vmem_limit_bytes=32 * 1024 * 1024,
        ),
    )(x2, pe2)

    return out2.reshape(B, h, w, d)


if __name__ == "__main__":
    key = jax.random.PRNGKey(0)

    # --- Test 1: module-consistent small shape, f32 (single grid step, lane-dense 512) ---
    batch, h, w, d_model = 2, 16, 16, 32
    max_h, max_w = 32, 32
    pe_buffer = build_pe_buffer(d_model, max_h, max_w)

    x = jax.random.normal(key, (batch, h, w, d_model), dtype=jnp.float32)
    out = jax.block_until_ready(sinusoidal_pe_2d(x, pe_buffer))
    ref = x + pe_buffer[:h, :w, :]
    assert out.shape == x.shape and out.dtype == x.dtype
    assert jnp.allclose(out, ref, atol=1e-6, rtol=1e-6)

    # --- Test 2: bf16 input — add happens in f32 in-kernel, cast once on store ---
    x_bf16 = x.astype(jnp.bfloat16)
    out_bf16 = jax.block_until_ready(sinusoidal_pe_2d(x_bf16, pe_buffer))
    ref_bf16 = (x_bf16.astype(jnp.float32) + pe_buffer[:h, :w, :]).astype(jnp.bfloat16)
    assert out_bf16.dtype == jnp.bfloat16
    assert jnp.allclose(out_bf16.astype(jnp.float32), ref_bf16.astype(jnp.float32),
                        atol=5e-2, rtol=5e-2)

    # --- Test 3: force the row-tiled multi-step pipeline path (small block budget) ---
    h3, w3 = 64, 16
    pe_buffer3 = build_pe_buffer(d_model, h3, max_w)
    x3 = jax.random.normal(jax.random.PRNGKey(1), (1, h3, w3, d_model), dtype=jnp.float32)
    out3 = jax.block_until_ready(
        sinusoidal_pe_2d(x3, pe_buffer3, block_bytes=16 * 1024))
    ref3 = x3 + pe_buffer3[:h3, :w3, :]
    assert jnp.allclose(out3, ref3, atol=1e-6, rtol=1e-6)

    print("KERNEL_OK")
</pallas_src>

<mosaic_0001>
module attributes {stable_mosaic.version = 11 : i64} {
  func.func @_add_pe_kernel(%arg0: i32, %arg1: i32, %arg2: memref<2x16x512xf32, #tpu.memory_space<vmem>>, %arg3: memref<16x512xf32, #tpu.memory_space<vmem>>, %arg4: memref<2x16x512xf32, #tpu.memory_space<vmem>>) attributes {dimension_semantics = [#tpu.dimension_semantics<parallel>, #tpu.dimension_semantics<parallel>], iteration_bounds = array<i64: 1, 1>, scalar_prefetch = 0 : i64, scratch_operands = 0 : i64, tpu.core_type = #tpu.core_type<tc>, window_params = [{transform_indices = @transform_0, window_bounds = array<i64: 2, 16, 512>}, {pipeline_mode = #tpu.pipeline_mode<synchronous>, transform_indices = @transform_1, window_bounds = array<i64: 16, 512>}, {transform_indices = @transform_2, window_bounds = array<i64: 2, 16, 512>}]} {
    %c0 = arith.constant 0 : index
    %c0_0 = arith.constant 0 : index
    %c0_1 = arith.constant 0 : index
    %0 = vector.load %arg2[%c0, %c0_0, %c0_1] : memref<2x16x512xf32, #tpu.memory_space<vmem>>, vector<2x16x512xf32>
    %c0_2 = arith.constant 0 : index
    %c0_3 = arith.constant 0 : index
    %1 = vector.load %arg3[%c0_2, %c0_3] : memref<16x512xf32, #tpu.memory_space<vmem>>, vector<16x512xf32>
    %2 = vector.shape_cast %1 : vector<16x512xf32> to vector<1x16x512xf32>
    %3 = vector.broadcast %2 : vector<1x16x512xf32> to vector<2x16x512xf32>
    %4 = arith.addf %0, %3 : vector<2x16x512xf32>
    %c0_4 = arith.constant 0 : index
    %c0_5 = arith.constant 0 : index
    %c0_6 = arith.constant 0 : index
    %5 = vector.load %arg4[%c0_4, %c0_5, %c0_6] : memref<2x16x512xf32, #tpu.memory_space<vmem>>, vector<2x16x512xf32>
    tpu.vector_store %arg4[%c0_4, %c0_5, %c0_6], %4 {strides = array<i32>} : memref<2x16x512xf32, #tpu.memory_space<vmem>>, vector<2x16x512xf32>,
    return
  }
  func.func @transform_0(%arg0: i32, %arg1: i32) -> (i32, i32, i32) {
    %c0_i32 = arith.constant 0 : i32
    %c0_i32_0 = arith.constant 0 : i32
    return %arg1, %arg0, %c0_i32 : i32, i32, i32
  }
  func.func @transform_1(%arg0: i32, %arg1: i32) -> (i32, i32) {
    %c0_i32 = arith.constant 0 : i32
    %c0_i32_0 = arith.constant 0 : i32
    %c0_i32_1 = arith.constant 0 : i32
    return %c0_i32, %c0_i32_0 : i32, i32
  }
  func.func @transform_2(%arg0: i32, %arg1: i32) -> (i32, i32, i32) {
    %c0_i32 = arith.constant 0 : i32
    %c0_i32_0 = arith.constant 0 : i32
    return %arg1, %arg0, %c0_i32 : i32, i32, i32
  }
}

</mosaic_0001>

<llo_original>
// kernel: tpu_custom_call.1
$region0: #{tpu_custom_call.1}
  #allocation0 [shape = 'u32[]', space=smem, size = 0x4, offset = 0x4, fixed_abs, tag = 'smem constant byte address 0x4 - core index']
  #allocation1 [shape = 'u32[72,128]{1,0:T(1,128)}', space=vmem, size = 0x9000, scoped, tag = 'internal scratch']
  %s0 = inlined_call_operand.hbm [shape: f32[2,16,512], index: 0, kind: input, shape index: {}]
  %s1 = inlined_call_operand.hbm [shape: f32[16,512], index: 1, kind: input, shape index: {}]
  %s2 = inlined_call_operand.hbm [shape: f32[2,16,512], index: 2, kind: output, shape index: {}]
  %s3 = sld [smem:[#allocation0]]
  $region26: #{tpu_custom_call.1} parent=0
    _
  %s5 = ssub.s32 1, %s3
  %s6 = scalar_select 0, %s5, %s3
  $region1: #{tpu_custom_call.1} parent=0
    #allocation2 [shape = 'u8[65536]{0}', space=vmem, size = 0x10000, scoped, tag = 'input window, operand 0, single buffered']
    #allocation3 [shape = 's32[1]{0}', space=sflag, size = 0x4, scoped, tag = 'scoped memory for tpu_custom_call.1']
    #allocation4 [shape = 's32[1]{0}', space=sflag, size = 0x4, scoped, tag = 'scoped memory for tpu_custom_call.1']
    #allocation5 [shape = 'u8[32768]{0}', space=vmem, size = 0x8000, scoped, tag = 'input window, operand 1, single buffered']
    #allocation6 [shape = 's32[1]{0}', space=sflag, size = 0x4, scoped, tag = 'scoped memory for tpu_custom_call.1']
    #allocation7 [shape = 'u8[65536]{0}', space=vmem, size = 0x10000, scoped, tag = 'output window, operand 0, single buffered']
    %7 = vsyncpa [#allocation3], 0
    %8 = vsyncpa [#allocation6], 0
    %9 = vsyncpa [#allocation4], 0
    // Predicated region
    $region2: #{tpu_custom_call.1} parent=1 // pred_check
      _
    $region3: #{tpu_custom_call.1} parent=1 // pred_check_branch
      %11 = sbr.rel (0) target = $region5
    $region4: #{tpu_custom_call.1} parent=1 // pred_region
      %13 = vsyncadd [#allocation3], 0
      %s14 = sshll.u32 %s0, 4
      %s15 = int_to_ptr.hbm [resolvable:$true] %s14
      %s16 = sshll.u32 [#allocation2], 4
      %s17 = int_to_ptr.vmem [resolvable:$true] %s16
      %22 = dma.hbm_to_vmem [thread:$0]  %s15, 2048, %s17, [#allocation3], 512, 512, 32
    $region5: #{tpu_custom_call.1} parent=1 // pred_fallthru
      _
    // Predicated region
    $region6: #{tpu_custom_call.1} parent=1 // pred_check
      _
    $region7: #{tpu_custom_call.1} parent=1 // pred_check_branch
      %24 = sbr.rel (0) target = $region9
    $region8: #{tpu_custom_call.1} parent=1 // pred_region
      %26 = vsyncadd [#allocation6], 0
      %s27 = sshll.u32 %s1, 4
      %s28 = int_to_ptr.hbm [resolvable:$true] %s27
      %s29 = sshll.u32 [#allocation5], 4
      %s30 = int_to_ptr.vmem [resolvable:$true] %s29
      %35 = dma.hbm_to_vmem [thread:$0]  %s28, 1024, %s30, [#allocation6], 512, 512, 32
    $region9: #{tpu_custom_call.1} parent=1 // pred_fallthru
      _
    // Predicated region
    $region10: #{tpu_custom_call.1} parent=1 // pred_check
      _
    $region11: #{tpu_custom_call.1} parent=1 // pred_check_branch
      %37 = sbr.rel (0) target = $region13
    $region12: #{tpu_custom_call.1} parent=1 // pred_region
      %39 = dma.done [#allocation3], 2048
    $region13: #{tpu_custom_call.1} parent=1 // pred_fallthru
      _
    // Predicated region
    $region14: #{tpu_custom_call.1} parent=1 // pred_check
      _
    $region15: #{tpu_custom_call.1} parent=1 // pred_check_branch
      %41 = sbr.rel (0) target = $region17
    $region16: #{tpu_custom_call.1} parent=1 // pred_region
      %43 = dma.done [#allocation6], 1024
    $region17: #{tpu_custom_call.1} parent=1 // pred_fallthru
      _
    %v44 = vld [vmem:[#allocation2] sm:$0xff]
    %v45 = vld [vmem:[#allocation2 + $0x8] sm:$0xff]
    %v46 = vld [vmem:[#allocation2 + $0x10] sm:$0xff]
    %v47 = vld [vmem:[#allocation2 + $0x18] sm:$0xff]
    %v48 = vld [vmem:[#allocation2 + $0x20] sm:$0xff]
    %v49 = vld [vmem:[#allocation2 + $0x28] sm:$0xff]
    %v50 = vld [vmem:[#allocation2 + $0x30] sm:$0xff]
    %v51 = vld [vmem:[#allocation2 + $0x38] sm:$0xff]
    %v52 = vld [vmem:[#allocation2 + $0x40] sm:$0xff]
    %v53 = vld [vmem:[#allocation2 + $0x48] sm:$0xff]
    %v54 = vld [vmem:[#allocation2 + $0x50] sm:$0xff]
    %v55 = vld [vmem:[#allocation2 + $0x58] sm:$0xff]
    %v56 = vld [vmem:[#allocation2 + $0x60] sm:$0xff]
    %v57 = vld [vmem:[#allocation2 + $0x68] sm:$0xff]
    %v58 = vld [vmem:[#allocation2 + $0x70] sm:$0xff]
    %v59 = vld [vmem:[#allocation2 + $0x78] sm:$0xff]
    %v60 = vld [vmem:[#allocation5] sm:$0xff]
    %v61 = vld [vmem:[#allocation5 + $0x8] sm:$0xff]
    %v62 = vld [vmem:[#allocation5 + $0x10] sm:$0xff]
    %v63 = vld [vmem:[#allocation5 + $0x18] sm:$0xff]
    %v64 = vld [vmem:[#allocation5 + $0x20] sm:$0xff]
    %v65 = vld [vmem:[#allocation5 + $0x28] sm:$0xff]
    %v66 = vld [vmem:[#allocation5 + $0x30] sm:$0xff]
    %v67 = vld [vmem:[#allocation5 + $0x38] sm:$0xff]
    %v68 = vadd.f32 %v44, %v60
    %v69 = vadd.f32 %v45, %v61
    %v70 = vadd.f32 %v46, %v62
    %v71 = vadd.f32 %v47, %v63
    %v72 = vadd.f32 %v48, %v64
    %v73 = vadd.f32 %v49, %v65
    %v74 = vadd.f32 %v50, %v66
    %v75 = vadd.f32 %v51, %v67
    %v76 = vadd.f32 %v52, %v60
    %v77 = vadd.f32 %v53, %v61
    %v78 = vadd.f32 %v54, %v62
    %v79 = vadd.f32 %v55, %v63
    %v80 = vadd.f32 %v56, %v64
    %v81 = vadd.f32 %v57, %v65
    %v82 = vadd.f32 %v58, %v66
    %v83 = vadd.f32 %v59, %v67
    %84 = vst [vmem:[#allocation7] sm:$0xff] %v68
    %85 = vst [vmem:[#allocation7 + $0x8] sm:$0xff] %v69
    %86 = vst [vmem:[#allocation7 + $0x10] sm:$0xff] %v70
    %87 = vst [vmem:[#allocation7 + $0x18] sm:$0xff] %v71
    %88 = vst [vmem:[#allocation7 + $0x20] sm:$0xff] %v72
    %89 = vst [vmem:[#allocation7 + $0x28] sm:$0xff] %v73
    %90 = vst [vmem:[#allocation7 + $0x30] sm:$0xff] %v74
    %91 = vst [vmem:[#allocation7 + $0x38] sm:$0xff] %v75
    %92 = vst [vmem:[#allocation7 + $0x40] sm:$0xff] %v76
    %93 = vst [vmem:[#allocation7 + $0x48] sm:$0xff] %v77
    %94 = vst [vmem:[#allocation7 + $0x50] sm:$0xff] %v78
    %95 = vst [vmem:[#allocation7 + $0x58] sm:$0xff] %v79
    %96 = vst [vmem:[#allocation7 + $0x60] sm:$0xff] %v80
    %97 = vst [vmem:[#allocation7 + $0x68] sm:$0xff] %v81
    %98 = vst [vmem:[#allocation7 + $0x70] sm:$0xff] %v82
    %99 = vst [vmem:[#allocation7 + $0x78] sm:$0xff] %v83
    // Predicated region
    $region18: #{tpu_custom_call.1} parent=1 // pred_check
      _
    $region19: #{tpu_custom_call.1} parent=1 // pred_check_branch
      %101 = sbr.rel (0) target = $region21
    $region20: #{tpu_custom_call.1} parent=1 // pred_region
      %103 = vsyncadd [#allocation4], 0
      %s104 = sshll.u32 [#allocation7], 4
      %s105 = int_to_ptr.vmem [resolvable:$true] %s104
      %s106 = sshll.u32 %s2, 4
      %s107 = int_to_ptr.hbm [resolvable:$true] %s106
      %112 = dma.vmem_to_hbm [thread:$0]  %s105, 2048, %s107, [#allocation4], 512, 512, 32
    $region21: #{tpu_custom_call.1} parent=1 // pred_fallthru
      _
    // Predicated region
    $region22: #{tpu_custom_call.1} parent=1 // pred_check
      _
    $region23: #{tpu_custom_call.1} parent=1 // pred_check_branch
      %114 = sbr.rel (0) target = $region25
    $region24: #{tpu_custom_call.1} parent=1 // pred_region
      %116 = dma.done [#allocation4], 2048
    $region25: #{tpu_custom_call.1} parent=1 // pred_fallthru
      _
    %117 = vsyncpa [#allocation3], 1
    %118 = vsyncpa [#allocation6], 1
    %119 = vsyncpa [#allocation4], 1

</llo_original>
